<compile_context>
chip_gen: v6e
topology: v6e:2x2x1
jax: 0.10.0
libtpu: 0.0.40
codegen_flags: <defaults>
</compile_context>

<pallas_src>
import functools

import jax
import jax.numpy as jnp
from jax.experimental import pallas as pl
from jax.experimental.pallas import tpu as pltpu

_LANES = 128


def _round_up(x: int, m: int) -> int:
    return (x + m - 1) // m * m


def _vlv_kernel(mu_ref, log_sigma_ref, eps_ref, sample_ref, kl_ref,
                *, tile_rows: int, total_elems: int):
    """One lane-dense (tile_rows, 128) tile of the forward pass."""
    i = pl.program_id(0)

    mu = mu_ref[...]
    log_sigma = log_sigma_ref[...]
    eps = eps_ref[...]

    # softplus (torch.nn.functional.softplus, beta=1), numerically stable.
    sigma = jnp.logaddexp(jnp.float32(0.0), log_sigma)

    # Reparameterized sample: Normal(mu, sigma).rsample() == mu + sigma * eps.
    sample_ref[...] = mu + sigma * eps

    # KL(N(mu, sigma) || N(0, 1)) elementwise.
    # TODO(synk): prior hard-coded to the standard normal; a non-standard
    # prior_x (non-zero mean / non-unit scale) would need extra inputs.
    kl_elem = -jnp.log(sigma) + 0.5 * (sigma * sigma + mu * mu) - 0.5

    # Zero out the zero-padded tail of the flattened lane-dense slab.
    row = jax.lax.broadcasted_iota(jnp.int32, (tile_rows, _LANES), 0)
    lane = jax.lax.broadcasted_iota(jnp.int32, (tile_rows, _LANES), 1)
    flat_idx = (i * tile_rows + row) * _LANES + lane
    kl_elem = jnp.where(flat_idx < total_elems, kl_elem, 0.0)

    # Per-tile partial sum -> (1,1) SMEM output block (no padded vector store).
    kl_ref[0, 0] = jnp.sum(kl_elem)


def variational_latent_variable_forward(q_mu, q_log_sigma, eps, data_dim,
                                        *, tile_rows: int = 512):
    """Returns (sample, kl_loss) matching VariationalLatentVariable.forward.

    q_mu, q_log_sigma, eps: (n, latent_dim) float32.
    kl_loss is returned as a () scalar.
    """
    n, latent_dim = q_mu.shape
    assert q_log_sigma.shape == (n, latent_dim)
    assert eps.shape == (n, latent_dim)
    assert tile_rows % 8 == 0

    total = n * latent_dim
    rows = pl.cdiv(total, _LANES)
    # Largest tile that is a multiple of 8 sublanes and not bigger than needed.
    tile = min(tile_rows, _round_up(rows, 8))
    padded_rows = _round_up(rows, tile)
    num_tiles = padded_rows // tile
    padded_total = padded_rows * _LANES

    def to_slab(x):
        flat = jnp.reshape(x, (-1,))
        flat = jnp.pad(flat, (0, padded_total - total))
        return jnp.reshape(flat, (padded_rows, _LANES))

    mu_s = to_slab(q_mu.astype(jnp.float32))
    ls_s = to_slab(q_log_sigma.astype(jnp.float32))
    eps_s = to_slab(eps.astype(jnp.float32))

    kernel = functools.partial(_vlv_kernel, tile_rows=tile, total_elems=total)

    slab_spec = pl.BlockSpec((tile, _LANES), lambda i: (i, 0))
    kl_spec = pl.BlockSpec((1, 1), lambda i: (i, 0),
                           memory_space=pltpu.MemorySpace.SMEM)

    sample_slab, kl_partials = pl.pallas_call(
        kernel,
        out_shape=(
            jax.ShapeDtypeStruct((padded_rows, _LANES), jnp.float32),
            jax.ShapeDtypeStruct((num_tiles, 1), jnp.float32),
        ),
        grid_spec=pltpu.PrefetchScalarGridSpec(
            num_scalar_prefetch=0,
            grid=(num_tiles,),
            in_specs=[slab_spec, slab_spec, slab_spec],
            out_specs=(slab_spec, kl_spec),
        ),
        compiler_params=pltpu.CompilerParams(
            # No cross-iteration state (per-tile partial KL), so the row axis
            # is truly parallel -> shards across v7x's 2 TCs, no-op elsewhere.
            dimension_semantics=("parallel",),
            # Headroom if tile_rows is pushed large; safe on v5e/v6e/v7x.
            vmem_limit_bytes=32 * 1024 * 1024,
        ),
    )(mu_s, ls_s, eps_s)

    sample = jnp.reshape(sample_slab, (-1,))[:total].reshape(n, latent_dim)
    kl = jnp.sum(kl_partials) / jnp.float32(n * data_dim)
    return sample, kl


def _reference(q_mu, q_log_sigma, eps, data_dim):
    n = q_mu.shape[0]
    sigma = jax.nn.softplus(q_log_sigma)
    sample = q_mu + sigma * eps
    kl_elem = -jnp.log(sigma) + 0.5 * (sigma**2 + q_mu**2) - 0.5
    kl = jnp.sum(kl_elem) / n / data_dim
    return sample, kl


if __name__ == "__main__":
    def run_case(n, latent_dim, data_dim, tile_rows, key):
        k_mu, k_ls, k_eps = jax.random.split(key, 3)
        q_mu = jax.random.normal(k_mu, (n, latent_dim), dtype=jnp.float32)
        q_log_sigma = jax.random.normal(k_ls, (n, latent_dim), dtype=jnp.float32)
        eps = jax.random.normal(k_eps, (n, latent_dim), dtype=jnp.float32)

        sample, kl = variational_latent_variable_forward(
            q_mu, q_log_sigma, eps, data_dim, tile_rows=tile_rows)
        jax.block_until_ready((sample, kl))

        ref_sample, ref_kl = _reference(q_mu, q_log_sigma, eps, data_dim)
        assert sample.shape == (n, latent_dim)
        assert jnp.allclose(sample, ref_sample, atol=1e-5, rtol=1e-5)
        assert jnp.allclose(kl, ref_kl, atol=1e-5, rtol=1e-4)

    root = jax.random.PRNGKey(0)
    k1, k2 = jax.random.split(root)

    # Module-default-ish small shape (exercises the padding/masking path;
    # at this size an XLA fusion would be preferable, kernel is for scale).
    run_case(n=8, latent_dim=32, data_dim=16, tile_rows=512, key=k1)

    # Larger shape forcing a multi-tile grid (exercises pipelining and the
    # per-tile SMEM partial-KL path: 256*128 elems -> 4 tiles of 64 rows).
    run_case(n=256, latent_dim=128, data_dim=64, tile_rows=64, key=k2)

    print("KERNEL_OK")
</pallas_src>

<mosaic_0001>
module attributes {stable_mosaic.version = 11 : i64} {
  func.func @_vlv_kernel(%arg0: i32, %arg1: memref<8x128xf32, #tpu.memory_space<vmem>>, %arg2: memref<8x128xf32, #tpu.memory_space<vmem>>, %arg3: memref<8x128xf32, #tpu.memory_space<vmem>>, %arg4: memref<8x128xf32, #tpu.memory_space<vmem>>, %arg5: memref<1x1xf32, #tpu.memory_space<smem>>) attributes {dimension_semantics = [#tpu.dimension_semantics<parallel>], iteration_bounds = array<i64: 1>, scalar_prefetch = 0 : i64, scratch_operands = 0 : i64, tpu.core_type = #tpu.core_type<tc>, window_params = [{transform_indices = @transform_0, window_bounds = array<i64: 8, 128>}, {transform_indices = @transform_1, window_bounds = array<i64: 8, 128>}, {transform_indices = @transform_2, window_bounds = array<i64: 8, 128>}, {transform_indices = @transform_3, window_bounds = array<i64: 8, 128>}, {transform_indices = @transform_4, window_bounds = array<i64: 1, 1>}]} {
    %c0 = arith.constant 0 : index
    %c0_0 = arith.constant 0 : index
    %0 = vector.load %arg1[%c0, %c0_0] : memref<8x128xf32, #tpu.memory_space<vmem>>, vector<8x128xf32>
    %c0_1 = arith.constant 0 : index
    %c0_2 = arith.constant 0 : index
    %1 = vector.load %arg2[%c0_1, %c0_2] : memref<8x128xf32, #tpu.memory_space<vmem>>, vector<8x128xf32>
    %c0_3 = arith.constant 0 : index
    %c0_4 = arith.constant 0 : index
    %2 = vector.load %arg3[%c0_3, %c0_4] : memref<8x128xf32, #tpu.memory_space<vmem>>, vector<8x128xf32>
    %cst = arith.constant 0.000000e+00 : f32
    %3 = vector.broadcast %cst : f32 to vector<8x128xf32>
    %4 = arith.maximumf %3, %1 : vector<8x128xf32>
    %5 = vector.broadcast %cst : f32 to vector<8x128xf32>
    %6 = arith.subf %5, %1 : vector<8x128xf32>
    %7 = arith.cmpf one, %6, %6 : vector<8x128xf32>
    %8 = vector.broadcast %cst : f32 to vector<8x128xf32>
    %9 = arith.addf %8, %1 : vector<8x128xf32>
    %10 = math.absf %6 : vector<8x128xf32>
    %cst_5 = arith.constant 0.000000e+00 : f32
    %11 = vector.broadcast %cst_5 : f32 to vector<8x128xf32>
    %12 = arith.subf %11, %10 : vector<8x128xf32>
    %13 = math.exp %12 : vector<8x128xf32>
    %14 = math.log1p %13 : vector<8x128xf32>
    %15 = arith.addf %4, %14 : vector<8x128xf32>
    %16 = arith.select %7, %9, %15 : vector<8x128xi1>, vector<8x128xf32>
    %17 = arith.mulf %16, %2 : vector<8x128xf32>
    %18 = arith.addf %0, %17 : vector<8x128xf32>
    %c0_6 = arith.constant 0 : index
    %c0_7 = arith.constant 0 : index
    %19 = vector.load %arg4[%c0_6, %c0_7] : memref<8x128xf32, #tpu.memory_space<vmem>>, vector<8x128xf32>
    tpu.vector_store %arg4[%c0_6, %c0_7], %18 {strides = array<i32>} : memref<8x128xf32, #tpu.memory_space<vmem>>, vector<8x128xf32>,
    %20 = math.log %16 : vector<8x128xf32>
    %cst_8 = arith.constant 0.000000e+00 : f32
    %21 = vector.broadcast %cst_8 : f32 to vector<8x128xf32>
    %22 = arith.subf %21, %20 : vector<8x128xf32>
    %23 = arith.mulf %16, %16 : vector<8x128xf32>
    %24 = arith.mulf %0, %0 : vector<8x128xf32>
    %25 = arith.addf %23, %24 : vector<8x128xf32>
    %cst_9 = arith.constant 5.000000e-01 : f32
    %26 = vector.broadcast %cst_9 : f32 to vector<8x128xf32>
    %27 = arith.mulf %26, %25 : vector<8x128xf32>
    %28 = arith.addf %22, %27 : vector<8x128xf32>
    %cst_10 = arith.constant 5.000000e-01 : f32
    %29 = vector.broadcast %cst_10 : f32 to vector<8x128xf32>
    %30 = arith.subf %28, %29 : vector<8x128xf32>
    %31 = tpu.iota {dimensions = array<i32: 0>} : vector<8x128xi32>
    %32 = tpu.iota {dimensions = array<i32: 1>} : vector<8x128xi32>
    %c8_i32 = arith.constant 8 : i32
    %33 = arith.muli %arg0, %c8_i32 : i32
    %34 = vector.broadcast %33 : i32 to vector<8x128xi32>
    %35 = arith.addi %34, %31 : vector<8x128xi32>
    %c128_i32 = arith.constant 128 : i32
    %36 = vector.broadcast %c128_i32 : i32 to vector<8x128xi32>
    %37 = arith.muli %35, %36 : vector<8x128xi32>
    %38 = arith.addi %37, %32 : vector<8x128xi32>
    %c256_i32 = arith.constant 256 : i32
    %39 = vector.broadcast %c256_i32 : i32 to vector<8x128xi32>
    %40 = arith.cmpi slt, %38, %39 : vector<8x128xi32>
    %cst_11 = arith.constant 0.000000e+00 : f32
    %41 = vector.broadcast %cst_11 : f32 to vector<8x128xf32>
    %42 = arith.select %40, %30, %41 : vector<8x128xi1>, vector<8x128xf32>
    %43 = vector.shape_cast %42 : vector<8x128xf32> to vector<1x8x128xf32>
    %cst_12 = arith.constant dense<0.000000e+00> : vector<1xf32>
    %44 = vector.multi_reduction <add>, %43, %cst_12 [1, 2] : vector<1x8x128xf32> to vector<1xf32>
    %45 = vector.shape_cast %44 : vector<1xf32> to vector<1x1x1xf32>
    %46 = vector.extract %45[0, 0, 0] : f32 from vector<1x1x1xf32>
    %c0_13 = arith.constant 0 : index
    %c0_14 = arith.constant 0 : index
    %47 = memref.load %arg5[%c0_13, %c0_14] : memref<1x1xf32, #tpu.memory_space<smem>>
    memref.store %46, %arg5[%c0_13, %c0_14] : memref<1x1xf32, #tpu.memory_space<smem>>
    return
  }
  func.func @transform_0(%arg0: i32) -> (i32, i32) {
    %c0_i32 = arith.constant 0 : i32
    %c0_i32_0 = arith.constant 0 : i32
    return %arg0, %c0_i32 : i32, i32
  }
  func.func @transform_1(%arg0: i32) -> (i32, i32) {
    %c0_i32 = arith.constant 0 : i32
    %c0_i32_0 = arith.constant 0 : i32
    return %arg0, %c0_i32 : i32, i32
  }
  func.func @transform_2(%arg0: i32) -> (i32, i32) {
    %c0_i32 = arith.constant 0 : i32
    %c0_i32_0 = arith.constant 0 : i32
    return %arg0, %c0_i32 : i32, i32
  }
  func.func @transform_3(%arg0: i32) -> (i32, i32) {
    %c0_i32 = arith.constant 0 : i32
    %c0_i32_0 = arith.constant 0 : i32
    return %arg0, %c0_i32 : i32, i32
  }
  func.func @transform_4(%arg0: i32) -> (i32, i32) {
    %c0_i32 = arith.constant 0 : i32
    %c0_i32_0 = arith.constant 0 : i32
    return %arg0, %c0_i32 : i32, i32
  }
}

</mosaic_0001>

<llo_original>
// kernel: tpu_custom_call.1
$region0: #{tpu_custom_call.1}
  #allocation0 [shape = 'u32[]', space=smem, size = 0x4, offset = 0x4, fixed_abs, tag = 'smem constant byte address 0x4 - core index']
  #allocation1 [shape = 'u32[144,128]{1,0:T(1,128)}', space=vmem, size = 0x12000, scoped, tag = 'internal scratch']
  %s0 = inlined_call_operand.hbm [shape: f32[8,128], index: 0, kind: input, shape index: {}]
  %s1 = inlined_call_operand.hbm [shape: f32[8,128], index: 1, kind: input, shape index: {}]
  %s2 = inlined_call_operand.hbm [shape: f32[8,128], index: 2, kind: input, shape index: {}]
  %s3 = inlined_call_operand.hbm [shape: f32[8,128], index: 3, kind: output, shape index: {0}]
  %s4 = inlined_call_operand.hbm [shape: f32[1,1], index: 4, kind: output, shape index: {1}]
  %5 = xla_tuple %s3, %s4
  %s6 = sld [smem:[#allocation0]]
  $region42: #{tpu_custom_call.1} parent=0
    _
  %s8 = ssub.s32 1, %s6
  %s9 = scalar_select 0, %s8, %s6
  $region1: #{tpu_custom_call.1} parent=0
    #allocation2 [shape = 'u8[4096]{0}', space=vmem, size = 0x1000, scoped, tag = 'input window, operand 0, single buffered']
    #allocation3 [shape = 's32[1]{0}', space=sflag, size = 0x4, scoped, tag = 'scoped memory for tpu_custom_call.1']
    #allocation4 [shape = 's32[1]{0}', space=sflag, size = 0x4, scoped, tag = 'scoped memory for tpu_custom_call.1']
    #allocation5 [shape = 's32[1]{0}', space=sflag, size = 0x4, scoped, tag = 'scoped memory for tpu_custom_call.1']
    #allocation6 [shape = 'u8[4096]{0}', space=vmem, size = 0x1000, scoped, tag = 'input window, operand 1, single buffered']
    #allocation7 [shape = 's32[1]{0}', space=sflag, size = 0x4, scoped, tag = 'scoped memory for tpu_custom_call.1']
    #allocation8 [shape = 'u8[4096]{0}', space=vmem, size = 0x1000, scoped, tag = 'input window, operand 2, single buffered']
    #allocation9 [shape = 'u8[4096]{0}', space=vmem, size = 0x1000, scoped, tag = 'output window, operand 0, single buffered']
    #allocation10 [shape = 'u8[512]{0}', space=smem, size = 0x200, scoped, tag = 'output window, operand 1, single buffered']
    %10 = vsyncpa [#allocation3], 0
    %11 = vsyncpa [#allocation7], 0
    %12 = vsyncpa [#allocation4], 0
    %13 = vsyncpa [#allocation5], 0
    // Predicated region
    $region2: #{tpu_custom_call.1} parent=1 // pred_check
      _
    $region3: #{tpu_custom_call.1} parent=1 // pred_check_branch
      %15 = sbr.rel (0) target = $region5
    $region4: #{tpu_custom_call.1} parent=1 // pred_region
      %s17 = ssub.s32 128, 128
      %18 = vsyncadd [#allocation3], %s17
      %s20 = sshll.u32 [#allocation2], 4
      %s21 = int_to_ptr.vmem [resolvable:$true] %s20
      %23 = dma.hbm_to_vmem [thread:$0]  %s0, 128, %s21, [#allocation3]
    $region5: #{tpu_custom_call.1} parent=1 // pred_fallthru
      _
    // Predicated region
    $region6: #{tpu_custom_call.1} parent=1 // pred_check
      _
    $region7: #{tpu_custom_call.1} parent=1 // pred_check_branch
      %25 = sbr.rel (0) target = $region9
    $region8: #{tpu_custom_call.1} parent=1 // pred_region
      %s27 = ssub.s32 128, 128
      %28 = vsyncadd [#allocation7], %s27
      %s30 = sshll.u32 [#allocation6], 4
      %s31 = int_to_ptr.vmem [resolvable:$true] %s30
      %33 = dma.hbm_to_vmem [thread:$0]  %s1, 128, %s31, [#allocation7]
    $region9: #{tpu_custom_call.1} parent=1 // pred_fallthru
      _
    // Predicated region
    $region10: #{tpu_custom_call.1} parent=1 // pred_check
      _
    $region11: #{tpu_custom_call.1} parent=1 // pred_check_branch
      %35 = sbr.rel (0) target = $region13
    $region12: #{tpu_custom_call.1} parent=1 // pred_region
      %s37 = ssub.s32 128, 128
      %38 = vsyncadd [#allocation7], %s37
      %s40 = sshll.u32 [#allocation8], 4
      %s41 = int_to_ptr.vmem [resolvable:$true] %s40
      %43 = dma.hbm_to_vmem [thread:$0]  %s2, 128, %s41, [#allocation7]
    $region13: #{tpu_custom_call.1} parent=1 // pred_fallthru
      _
    // Predicated region
    $region14: #{tpu_custom_call.1} parent=1 // pred_check
      _
    $region15: #{tpu_custom_call.1} parent=1 // pred_check_branch
      %45 = sbr.rel (0) target = $region17
    $region16: #{tpu_custom_call.1} parent=1 // pred_region
      %46 = dma.done [#allocation3], 128
    $region17: #{tpu_custom_call.1} parent=1 // pred_fallthru
      _
    // Predicated region
    $region18: #{tpu_custom_call.1} parent=1 // pred_check
      _
    $region19: #{tpu_custom_call.1} parent=1 // pred_check_branch
      %48 = sbr.rel (0) target = $region21
    $region20: #{tpu_custom_call.1} parent=1 // pred_region
      %49 = dma.done [#allocation7], 128
    $region21: #{tpu_custom_call.1} parent=1 // pred_fallthru
      _
    // Predicated region
    $region22: #{tpu_custom_call.1} parent=1 // pred_check
      _
    $region23: #{tpu_custom_call.1} parent=1 // pred_check_branch
      %51 = sbr.rel (0) target = $region25
    $region24: #{tpu_custom_call.1} parent=1 // pred_region
      %52 = dma.done [#allocation7], 128
    $region25: #{tpu_custom_call.1} parent=1 // pred_fallthru
      _
    %v53 = vld [vmem:[#allocation2] sm:$0xff]
    %v54 = vld [vmem:[#allocation6] sm:$0xff]
    %v55 = vld [vmem:[#allocation8] sm:$0xff]
    %v56 = vmax.f32 %v54, 0.0
    %v57 = vsub.f32 0.0, %v54
    %vm58 = vcmp.ne.f32.partialorder %v57, %v57
    %v59 = vadd.f32 %v54, 0.0
    %v60 = vand.u32 2147483647, %v57
    %v61 = vsub.f32 0.0, %v60
    %v62 = vmul.f32 %v61, 1.442695
    %v63 = vpow.pop %v62
    %v64 = vadd.f32 %v63, 1.0
    %v65 = vlog2.pop %v64
    %v66 = vmul.f32 %v65, 0.6931472
    %v67 = vmul.f32 -0.5, %v63
    %v68 = vadd.f32 %v67, 1.0
    %v69 = vmul.f32 %v68, %v63
    %v70 = vand.u32 2147483647, %v63
    %vm71 = vcmp.lt.f32.partialorder %v70, 0.0004427343
    %v72 = vsel %vm71, %v69, %v66
    %v73 = vadd.f32 %v56, %v72
    %v74 = vsel %vm58, %v59, %v73
    %v75 = vmul.f32 %v74, %v55
    %v76 = vadd.f32 %v53, %v75
    %77 = vst [vmem:[#allocation9] sm:$0xff] %v76
    %v78 = vlog2.pop %v74
    %v79 = vmul.f32 %v78, 0.6931472
    %v80 = vsub.f32 0.0, %v79
    %v81 = vmul.f32 %v74, %v74
    %v82 = vmul.f32 %v53, %v53
    %v83 = vadd.f32 %v81, %v82
    %v84 = vmul.f32 %v83, 0.5
    %v85 = vadd.f32 %v80, %v84
    %v86 = vsub.f32 %v85, 0.5
    %v87 = vlaneseq
    %v88 = vshrl.u32 %v87, 7
    %v89 = vlaneseq
    %v90 = vand.u32 %v89, 127
    %s91 = smul.u32 0, 8
    %v92 = vstv %s91
    %v93 = vadd.s32 %v92, %v88
    %v94 = vmul.u32 %v93, 128
    %v95 = vadd.s32 %v94, %v90
    %vm96 = vcmp.lt.s32.totalorder %v95, 256
    %v97 = vsel %vm96, %v86, 0.0
    %98 = vadd.xlane.f32.xlu0 %v97
    %v99 = vpop.xlane.xlu0 %98
    %v100 = vrot.slane %v99, 4
    %v101 = vadd.f32 %v99, %v100
    %v102 = vrot.slane %v101, 2
    %v103 = vadd.f32 %v101, %v102
    %v104 = vrot.slane %v103, 1
    %v105 = vadd.f32 %v103, %v104
    %s106 = vtos %v105
    %s107 = scalar_lea.smem [#allocation10], 0
    %108 = sst [smem:[%s107]] %s106
    // Predicated region
    $region26: #{tpu_custom_call.1} parent=1 // pred_check
      _
    $region27: #{tpu_custom_call.1} parent=1 // pred_check_branch
      %110 = sbr.rel (0) target = $region29
    $region28: #{tpu_custom_call.1} parent=1 // pred_region
      %s112 = ssub.s32 128, 128
      %113 = vsyncadd [#allocation4], %s112
      %s115 = sshll.u32 [#allocation9], 4
      %s116 = int_to_ptr.vmem [resolvable:$true] %s115
      %118 = dma.vmem_to_hbm [thread:$0]  %s116, 128, %s3, [#allocation4]
    $region29: #{tpu_custom_call.1} parent=1 // pred_fallthru
      _
    // Predicated region
    $region30: #{tpu_custom_call.1} parent=1 // pred_check
      _
    $region31: #{tpu_custom_call.1} parent=1 // pred_check_branch
      %120 = sbr.rel (0) target = $region33
    $region32: #{tpu_custom_call.1} parent=1 // pred_region
      %s122 = ssub.s32 16, 16
      %123 = vsyncadd [#allocation5], %s122
      %126 = dma.smem_to_hbm [#allocation10], 16, %s4, [#allocation5]
    $region33: #{tpu_custom_call.1} parent=1 // pred_fallthru
      _
    // Predicated region
    $region34: #{tpu_custom_call.1} parent=1 // pred_check
      _
    $region35: #{tpu_custom_call.1} parent=1 // pred_check_branch
      %128 = sbr.rel (0) target = $region37
    $region36: #{tpu_custom_call.1} parent=1 // pred_region
      %129 = dma.done [#allocation4], 128
    $region37: #{tpu_custom_call.1} parent=1 // pred_fallthru
      _
    // Predicated region
    $region38: #{tpu_custom_call.1} parent=1 // pred_check
      _
    $region39: #{tpu_custom_call.1} parent=1 // pred_check_branch
      %131 = sbr.rel (0) target = $region41
    $region40: #{tpu_custom_call.1} parent=1 // pred_region
      %132 = dma.done [#allocation5], 16
    $region41: #{tpu_custom_call.1} parent=1 // pred_fallthru
      _
    %133 = sfence
    %134 = vsyncpa [#allocation3], 1
    %135 = vsyncpa [#allocation7], 1
    %136 = vsyncpa [#allocation4], 1
    %137 = vsyncpa [#allocation5], 1

</llo_original>
